<compile_context>
chip_gen: v6e
topology: v6e:2x2x1
jax: 0.10.0
libtpu: 0.0.40
codegen_flags: <defaults>
</compile_context>

<pallas_src>
import math
from functools import partial

import jax
import jax.numpy as jnp
from jax.experimental import pallas as pl
from jax.experimental.pallas import tpu as pltpu


def ppo_kernel(clip_lo, clip_hi, log_const,
               state_ref, w1_ref, b1_ref, w2_ref, b2_ref,
               std_ref, noise_ref, out_ref):
    A = noise_ref.shape[1]

    state = state_ref[...]                                   # [TB, D] f32
    noise = noise_ref[...]                                   # [TB, A] f32

    # Fused actor+critic hidden layer: one [TB,D] x [D,2H] MXU dot.
    h = jnp.dot(state, w1_ref[...], preferred_element_type=jnp.float32)
    h = jnp.maximum(h + b1_ref[...], 0.0)                    # ReLU, [TB, 2H]

    # Fused second layer (block-diagonal W2): mean in cols [:A], value in col A.
    mv = jnp.dot(h, w2_ref[...], preferred_element_type=jnp.float32) + b2_ref[...]
    mean = mv[:, :A]                                         # [TB, A]
    value = mv[:, A:A + 1]                                   # [TB, 1]

    # std already hardtanh-clipped in the wrapper; hoisted [1,1] log-sum.
    std = std_ref[...]                                       # [1, A]
    log_std_sum = jnp.sum(jnp.log(std), axis=1, keepdims=True)  # [1, 1]

    # Reparameterised sample.
    act = mean + std * noise                                 # [TB, A]

    # log N(act | mean, std) summed over A, using (act - mean) == std * noise.
    logp = (-0.5 * jnp.sum(noise * noise, axis=1, keepdims=True)
            - log_std_sum - log_const)                       # [TB, 1]

    # Clip AFTER log_prob (as in the PyTorch module); pack everything into one
    # [TB, A+2] slab: [ action | log_prob | value ].
    out_ref[:, :A] = jnp.clip(act, clip_lo, clip_hi)
    out_ref[:, A:A + 1] = logp
    out_ref[:, A + 1:A + 2] = value


def ppo_actor_critic_forward(state, params, noise,
                             min_std=0.05, scale=1.0,
                             action_range_clip=(-1.0, 1.0),
                             block_b=256):
    B, D = state.shape
    H = params["w1a"].shape[1]
    A = params["w2a"].shape[1]

    # ---- one-time weight packing (cheap; cacheable under jit) ----
    w1 = jnp.concatenate([params["w1a"], params["w1c"]], axis=1)      # [D, 2H]
    b1 = jnp.concatenate([params["b1a"], params["b1c"]], axis=1)      # [1, 2H]
    w2 = jnp.zeros((2 * H, A + 1), jnp.float32)
    w2 = w2.at[:H, :A].set(params["w2a"])
    w2 = w2.at[H:, A:].set(params["w2c"])                             # block-diag
    b2 = jnp.concatenate([params["b2a"], params["b2c"]], axis=1)      # [1, A+1]

    # hardtanh(std, min_std, scale) done once here (also needed for entropy).
    std = jnp.clip(params["std"], min_std, scale)                     # [1, A]

    # ---- batch tiling: weights stay VMEM-resident, batch streams ----
    tb = min(block_b, B)
    assert B % tb == 0 and (tb % 8 == 0 or tb == B), "pick tb | B with tb % 8 == 0"
    grid = (B // tb,)

    kern = partial(ppo_kernel,
                   float(action_range_clip[0]), float(action_range_clip[1]),
                   0.5 * A * math.log(2.0 * math.pi))

    batched = lambda cols: pl.BlockSpec((tb, cols), lambda i: (i, 0))
    resident = lambda shape: pl.BlockSpec(shape, lambda i: (0, 0))

    packed = pl.pallas_call(
        kern,
        out_shape=jax.ShapeDtypeStruct((B, A + 2), jnp.float32),
        grid=grid,
        in_specs=[
            batched(D),                                       # state
            resident((D, 2 * H)), resident((1, 2 * H)),       # fused layer 1
            resident((2 * H, A + 1)), resident((1, A + 1)),   # fused layer 2
            resident((1, A)),                                 # clipped std
            batched(A),                                       # noise (std normal)
        ],
        out_specs=batched(A + 2),
        compiler_params=pltpu.CompilerParams(
            dimension_semantics=("parallel",)),
    )(state, w1, b1, w2, b2, std, noise)

    action = packed[:, :A]
    log_probs = packed[:, A:A + 1]
    value = packed[:, A + 1:A + 2]

    # Entropy of Normal(mean, std) depends only on std; the mean over the
    # broadcast [B, A] equals the mean over the [1, A] row, so compute it
    # outside the gridded kernel (keeps the grid embarrassingly parallel).
    entropy = jnp.mean(0.5 + 0.5 * math.log(2.0 * math.pi) + jnp.log(std))

    return action, log_probs, entropy, value


def make_params(key, state_dim, hidden, action_size, initial_std=0.2):
    ks = jax.random.split(key, 8)

    def lin(kw, fan_in, fan_out):
        bound = 1.0 / math.sqrt(fan_in)
        return jax.random.uniform(kw, (fan_in, fan_out), jnp.float32, -bound, bound)

    return {
        "w1a": lin(ks[0], state_dim, hidden),
        "b1a": jax.random.uniform(ks[1], (1, hidden), jnp.float32, -0.1, 0.1),
        "w2a": lin(ks[2], hidden, action_size),
        "b2a": jax.random.uniform(ks[3], (1, action_size), jnp.float32, -0.1, 0.1),
        "w1c": lin(ks[4], state_dim, hidden),
        "b1c": jax.random.uniform(ks[5], (1, hidden), jnp.float32, -0.1, 0.1),
        "w2c": lin(ks[6], hidden, 1),
        "b2c": jax.random.uniform(ks[7], (1, 1), jnp.float32, -0.1, 0.1),
        "std": jnp.ones((1, action_size), jnp.float32) * initial_std,
    }


def reference_forward(state, params, noise, min_std=0.05, scale=1.0, clip=(-1.0, 1.0)):
    # Pure-JAX reference mirroring the PyTorch module semantics (unfused).
    h_a = jnp.maximum(state @ params["w1a"] + params["b1a"], 0.0)
    mean = h_a @ params["w2a"] + params["b2a"]
    std = jnp.clip(params["std"], min_std, scale)
    act = mean + std * noise
    log2pi = math.log(2.0 * math.pi)
    lp = -0.5 * (act - mean) ** 2 / (std * std) - jnp.log(std) - 0.5 * log2pi
    log_probs = jnp.sum(lp, axis=1, keepdims=True)
    ent = jnp.mean(jnp.broadcast_to(0.5 + 0.5 * log2pi + jnp.log(std), act.shape))
    h_c = jnp.maximum(state @ params["w1c"] + params["b1c"], 0.0)
    value = h_c @ params["w2c"] + params["b2c"]
    act_clipped = jnp.clip(act, clip[0], clip[1])
    return act_clipped, log_probs, ent, value


if __name__ == "__main__":
    # Small but grid-exercising shapes: B=64 with tb=16 -> grid of 4 batch tiles.
    B, D, H, A = 64, 32, 32, 4

    key = jax.random.PRNGKey(0)
    k_params, k_state, k_noise = jax.random.split(key, 3)

    params = make_params(k_params, D, H, A)
    state = jax.random.normal(k_state, (B, D), jnp.float32)
    # Deterministic "sample" noise (eps for Normal(mean, std) reparam sampling).
    noise = jax.random.normal(k_noise, (B, A), jnp.float32)

    action, log_probs, entropy, value = ppo_actor_critic_forward(
        state, params, noise, block_b=16)
    jax.block_until_ready((action, log_probs, entropy, value))

    ref_a, ref_lp, ref_e, ref_v = reference_forward(state, params, noise)
    assert jnp.allclose(action, ref_a, rtol=1e-5, atol=1e-5), "action mismatch"
    assert jnp.allclose(log_probs, ref_lp, rtol=1e-5, atol=1e-5), "log_prob mismatch"
    assert jnp.allclose(entropy, ref_e, rtol=1e-5, atol=1e-5), "entropy mismatch"
    assert jnp.allclose(value, ref_v, rtol=1e-5, atol=1e-5), "value mismatch"

    print("KERNEL_OK")
</pallas_src>

<mosaic_0001>
module attributes {stable_mosaic.version = 11 : i64} {
  func.func @ppo_kernel(%arg0: i32, %arg1: memref<16x32xf32, #tpu.memory_space<vmem>>, %arg2: memref<32x64xf32, #tpu.memory_space<vmem>>, %arg3: memref<1x64xf32, #tpu.memory_space<vmem>>, %arg4: memref<64x5xf32, #tpu.memory_space<vmem>>, %arg5: memref<1x5xf32, #tpu.memory_space<vmem>>, %arg6: memref<1x4xf32, #tpu.memory_space<vmem>>, %arg7: memref<16x4xf32, #tpu.memory_space<vmem>>, %arg8: memref<16x6xf32, #tpu.memory_space<vmem>>) attributes {dimension_semantics = [#tpu.dimension_semantics<parallel>], iteration_bounds = array<i64: 4>, scalar_prefetch = 0 : i64, scratch_operands = 0 : i64, tpu.core_type = #tpu.core_type<tc>, window_params = [{transform_indices = @transform_0, window_bounds = array<i64: 16, 32>}, {pipeline_mode = #tpu.pipeline_mode<synchronous>, transform_indices = @transform_1, window_bounds = array<i64: 32, 64>}, {pipeline_mode = #tpu.pipeline_mode<synchronous>, transform_indices = @transform_2, window_bounds = array<i64: 1, 64>}, {pipeline_mode = #tpu.pipeline_mode<synchronous>, transform_indices = @transform_3, window_bounds = array<i64: 64, 5>}, {pipeline_mode = #tpu.pipeline_mode<synchronous>, transform_indices = @transform_4, window_bounds = array<i64: 1, 5>}, {pipeline_mode = #tpu.pipeline_mode<synchronous>, transform_indices = @transform_5, window_bounds = array<i64: 1, 4>}, {transform_indices = @transform_6, window_bounds = array<i64: 16, 4>}, {transform_indices = @transform_7, window_bounds = array<i64: 16, 6>}]} {
    %c0 = arith.constant 0 : index
    %c0_0 = arith.constant 0 : index
    %0 = vector.load %arg1[%c0, %c0_0] : memref<16x32xf32, #tpu.memory_space<vmem>>, vector<16x32xf32>
    %c0_1 = arith.constant 0 : index
    %c0_2 = arith.constant 0 : index
    %1 = vector.load %arg7[%c0_1, %c0_2] : memref<16x4xf32, #tpu.memory_space<vmem>>, vector<16x4xf32>
    %c0_3 = arith.constant 0 : index
    %c0_4 = arith.constant 0 : index
    %2 = vector.load %arg2[%c0_3, %c0_4] : memref<32x64xf32, #tpu.memory_space<vmem>>, vector<32x64xf32>
    %cst = arith.constant dense<0.000000e+00> : vector<16x64xf32>
    %3 = tpu.matmul %0, %2, %cst {dimension_numbers = #tpu.dot_dimension_numbers<[1], [0], [0], [1], [0, 0, 1, 1], [], []>} : vector<16x32xf32>, vector<32x64xf32>, vector<16x64xf32> -> vector<16x64xf32>
    %c0_5 = arith.constant 0 : index
    %c0_6 = arith.constant 0 : index
    %4 = vector.load %arg3[%c0_5, %c0_6] : memref<1x64xf32, #tpu.memory_space<vmem>>, vector<1x64xf32>
    %5 = vector.broadcast %4 : vector<1x64xf32> to vector<16x64xf32>
    %6 = arith.addf %3, %5 : vector<16x64xf32>
    %cst_7 = arith.constant 0.000000e+00 : f32
    %7 = vector.broadcast %cst_7 : f32 to vector<16x64xf32>
    %8 = arith.maximumf %6, %7 : vector<16x64xf32>
    %c0_8 = arith.constant 0 : index
    %c0_9 = arith.constant 0 : index
    %9 = vector.load %arg4[%c0_8, %c0_9] : memref<64x5xf32, #tpu.memory_space<vmem>>, vector<64x5xf32>
    %cst_10 = arith.constant dense<0.000000e+00> : vector<16x5xf32>
    %10 = tpu.matmul %8, %9, %cst_10 {dimension_numbers = #tpu.dot_dimension_numbers<[1], [0], [0], [1], [0, 0, 1, 1], [], []>} : vector<16x64xf32>, vector<64x5xf32>, vector<16x5xf32> -> vector<16x5xf32>
    %c0_11 = arith.constant 0 : index
    %c0_12 = arith.constant 0 : index
    %11 = vector.load %arg5[%c0_11, %c0_12] : memref<1x5xf32, #tpu.memory_space<vmem>>, vector<1x5xf32>
    %12 = vector.broadcast %11 : vector<1x5xf32> to vector<16x5xf32>
    %13 = arith.addf %10, %12 : vector<16x5xf32>
    %14 = vector.extract_strided_slice %13 {offsets = [0, 0], sizes = [16, 4], strides = [1, 1]} : vector<16x5xf32> to vector<16x4xf32>
    %15 = vector.extract_strided_slice %13 {offsets = [0, 4], sizes = [16, 1], strides = [1, 1]} : vector<16x5xf32> to vector<16x1xf32>
    %c0_13 = arith.constant 0 : index
    %c0_14 = arith.constant 0 : index
    %16 = vector.load %arg6[%c0_13, %c0_14] : memref<1x4xf32, #tpu.memory_space<vmem>>, vector<1x4xf32>
    %17 = math.log %16 : vector<1x4xf32>
    %cst_15 = arith.constant dense<0.000000e+00> : vector<1xf32>
    %18 = vector.multi_reduction <add>, %17, %cst_15 [1] : vector<1x4xf32> to vector<1xf32>
    %19 = vector.shape_cast %18 : vector<1xf32> to vector<1x1xf32>
    %20 = vector.broadcast %16 : vector<1x4xf32> to vector<16x4xf32>
    %21 = arith.mulf %20, %1 : vector<16x4xf32>
    %22 = arith.addf %14, %21 : vector<16x4xf32>
    %23 = arith.mulf %1, %1 : vector<16x4xf32>
    %cst_16 = arith.constant dense<0.000000e+00> : vector<16xf32>
    %24 = vector.multi_reduction <add>, %23, %cst_16 [1] : vector<16x4xf32> to vector<16xf32>
    %25 = vector.shape_cast %24 : vector<16xf32> to vector<16x1xf32>
    %cst_17 = arith.constant -5.000000e-01 : f32
    %26 = vector.broadcast %cst_17 : f32 to vector<16x1xf32>
    %27 = arith.mulf %26, %25 : vector<16x1xf32>
    %28 = vector.broadcast %19 : vector<1x1xf32> to vector<16x1xf32>
    %29 = arith.subf %27, %28 : vector<16x1xf32>
    %cst_18 = arith.constant 3.67575407 : f32
    %30 = vector.broadcast %cst_18 : f32 to vector<16x1xf32>
    %31 = arith.subf %29, %30 : vector<16x1xf32>
    %cst_19 = arith.constant -1.000000e+00 : f32
    %cst_20 = arith.constant 1.000000e+00 : f32
    %32 = vector.broadcast %cst_19 : f32 to vector<16x4xf32>
    %33 = arith.maximumf %32, %22 : vector<16x4xf32>
    %34 = vector.broadcast %cst_20 : f32 to vector<16x4xf32>
    %35 = arith.minimumf %34, %33 : vector<16x4xf32>
    %c0_21 = arith.constant 0 : index
    %c0_22 = arith.constant 0 : index
    %36 = vector.load %arg8[%c0_21, %c0_22] : memref<16x6xf32, #tpu.memory_space<vmem>>, vector<16x4xf32>
    tpu.vector_store %arg8[%c0_21, %c0_22], %35 {strides = array<i32>} : memref<16x6xf32, #tpu.memory_space<vmem>>, vector<16x4xf32>,
    %c0_23 = arith.constant 0 : index
    %c4 = arith.constant 4 : index
    %37 = vector.load %arg8[%c0_23, %c4] : memref<16x6xf32, #tpu.memory_space<vmem>>, vector<16x1xf32>
    tpu.vector_store %arg8[%c0_23, %c4], %31 {strides = array<i32>} : memref<16x6xf32, #tpu.memory_space<vmem>>, vector<16x1xf32>,
    %c0_24 = arith.constant 0 : index
    %c5 = arith.constant 5 : index
    %38 = vector.load %arg8[%c0_24, %c5] : memref<16x6xf32, #tpu.memory_space<vmem>>, vector<16x1xf32>
    tpu.vector_store %arg8[%c0_24, %c5], %15 {strides = array<i32>} : memref<16x6xf32, #tpu.memory_space<vmem>>, vector<16x1xf32>,
    return
  }
  func.func @transform_0(%arg0: i32) -> (i32, i32) {
    %c0_i32 = arith.constant 0 : i32
    %c0_i32_0 = arith.constant 0 : i32
    return %arg0, %c0_i32 : i32, i32
  }
  func.func @transform_1(%arg0: i32) -> (i32, i32) {
    %c0_i32 = arith.constant 0 : i32
    %c0_i32_0 = arith.constant 0 : i32
    %c0_i32_1 = arith.constant 0 : i32
    return %c0_i32, %c0_i32_0 : i32, i32
  }
  func.func @transform_2(%arg0: i32) -> (i32, i32) {
    %c0_i32 = arith.constant 0 : i32
    %c0_i32_0 = arith.constant 0 : i32
    %c0_i32_1 = arith.constant 0 : i32
    return %c0_i32, %c0_i32_0 : i32, i32
  }
  func.func @transform_3(%arg0: i32) -> (i32, i32) {
    %c0_i32 = arith.constant 0 : i32
    %c0_i32_0 = arith.constant 0 : i32
    %c0_i32_1 = arith.constant 0 : i32
    return %c0_i32, %c0_i32_0 : i32, i32
  }
  func.func @transform_4(%arg0: i32) -> (i32, i32) {
    %c0_i32 = arith.constant 0 : i32
    %c0_i32_0 = arith.constant 0 : i32
    %c0_i32_1 = arith.constant 0 : i32
    return %c0_i32, %c0_i32_0 : i32, i32
  }
  func.func @transform_5(%arg0: i32) -> (i32, i32) {
    %c0_i32 = arith.constant 0 : i32
    %c0_i32_0 = arith.constant 0 : i32
    %c0_i32_1 = arith.constant 0 : i32
    return %c0_i32, %c0_i32_0 : i32, i32
  }
  func.func @transform_6(%arg0: i32) -> (i32, i32) {
    %c0_i32 = arith.constant 0 : i32
    %c0_i32_0 = arith.constant 0 : i32
    return %arg0, %c0_i32 : i32, i32
  }
  func.func @transform_7(%arg0: i32) -> (i32, i32) {
    %c0_i32 = arith.constant 0 : i32
    %c0_i32_0 = arith.constant 0 : i32
    return %arg0, %c0_i32 : i32, i32
  }
}

</mosaic_0001>

<llo_original>
// kernel: tpu_custom_call.1
$region0: #{tpu_custom_call.1}
  #allocation0 [shape = 'u32[]', space=smem, size = 0x4, offset = 0x4, fixed_abs, tag = 'smem constant byte address 0x4 - core index']
  #allocation1 [shape = 'u32[144,128]{1,0:T(1,128)}', space=vmem, size = 0x12000, scoped, tag = 'internal scratch']
  %s0 = inlined_call_operand.vmem [shape: f32[64,32], index: 0, kind: input, shape index: {}]
  %s1 = inlined_call_operand.vmem [shape: f32[32,64], index: 1, kind: input, shape index: {}]
  %s2 = inlined_call_operand.vmem [shape: f32[1,64], index: 2, kind: input, shape index: {}]
  %s3 = inlined_call_operand.vmem [shape: f32[64,5], index: 3, kind: input, shape index: {}]
  %s4 = inlined_call_operand.vmem [shape: f32[1,5], index: 4, kind: input, shape index: {}]
  %s5 = inlined_call_operand.vmem [shape: f32[1,4], index: 5, kind: input, shape index: {}]
  %s6 = inlined_call_operand.vmem [shape: f32[64,4], index: 6, kind: input, shape index: {}]
  %s7 = inlined_call_operand.vmem [shape: f32[64,6], index: 7, kind: output, shape index: {}]
  %s8 = sld [smem:[#allocation0]]
  $region61: #{tpu_custom_call.1} parent=0
    _
  %s10 = ssub.s32 1, %s8
  %s11 = scalar_select 0, %s10, %s8
  loop: start=0, step=1, limit=6
  $region2: #{tpu_custom_call.1} parent=0 // loop_pre_header
    _
  $region3: #{tpu_custom_call.1} parent=0 // loop_header
    %s13 = sphi 0, %s17
    %p14 = scmp.ge.s32.totalorder %s13, 6
    %s23 = sphi 0, %s25
    %s26 = sphi 0, %s23
    %s27 = sphi 0, %s26
    %s43 = sphi 0, %s27
    %s47 = sphi 0, %s47
    %s49 = sphi 0, %s47
    %s50 = sphi 0, %s49
    %s64 = sphi 0, %s50
    %s68 = sphi 0, %s68
    %s70 = sphi 0, %s68
    %s71 = sphi 0, %s70
    %s85 = sphi 0, %s71
    %s89 = sphi 0, %s89
    %s91 = sphi 0, %s89
    %s92 = sphi 0, %s91
    %s106 = sphi 0, %s92
    %s110 = sphi 0, %s110
    %s112 = sphi 0, %s110
    %s113 = sphi 0, %s112
    %s127 = sphi 0, %s113
    %s131 = sphi 0, %s131
    %s133 = sphi 0, %s131
    %s134 = sphi 0, %s133
    %s148 = sphi 0, %s134
    %s154 = sphi 0, %s156
    %s157 = sphi 0, %s154
    %s158 = sphi 0, %s157
    %s174 = sphi 0, %s158
    %s180 = sphi 0, %s182
    %s183 = sphi 0, %s180
    %s184 = sphi 0, %s183
    %s200 = sphi 0, %s184
  $region4: #{tpu_custom_call.1} parent=0 // loop_header_branch
    %16 = sbr.rel (%p14) target = $region8
  $region5: #{tpu_custom_call.1} parent=0 // loop_body
    %s18 = ssub.s32 %s13, 1
    %s19 = ssub.s32 %s13, 2
    %s20 = sadd.s32 %s13, 1
    %s21 = ssub.s32 %s13, %s20
    %p22 = scmp.eq.s32.totalorder %s21, 0
    %s24 = sadd.s32 %s23, 1
    %s25 = scalar_select %p22, %s23, %s24
    %p28 = pneg %p22
    %p29 = scmp.eq.s32.totalorder %s13, 3
    %p30 = por %p28, %p29
    %p31 = scmp.ne.s32.totalorder %s23, %s26
    %p32 = scmp.eq.s32.totalorder %s13, 0
    %p33 = por %p31, %p32
    %p34 = scmp.ne.s32.totalorder %s23, %s26
    %p35 = scmp.eq.s32.totalorder %s18, 3
    %p36 = por %p34, %p35
    %p37 = scmp.ne.s32.totalorder %s26, %s27
    %p38 = scmp.eq.s32.totalorder %s18, 0
    %p39 = por %p37, %p38
    %p40 = scmp.ne.s32.totalorder %s26, %s27
    %p41 = scmp.eq.s32.totalorder %s19, 3
    %p42 = por %p40, %p41
    %p44 = scmp.ne.s32.totalorder %s27, %s43
    %p45 = scmp.eq.s32.totalorder %s19, 0
    %p46 = por %p44, %p45
    %s48 = sadd.s32 %s47, 1
    %p51 = scmp.eq.s32.totalorder %s13, 3
    %p52 = scmp.ne.s32.totalorder %s47, %s49
    %p53 = scmp.eq.s32.totalorder %s13, 0
    %p54 = por %p52, %p53
    %p55 = scmp.ne.s32.totalorder %s47, %s49
    %p56 = scmp.eq.s32.totalorder %s18, 3
    %p57 = por %p55, %p56
    %p58 = scmp.ne.s32.totalorder %s49, %s50
    %p59 = scmp.eq.s32.totalorder %s18, 0
    %p60 = por %p58, %p59
    %p61 = scmp.ne.s32.totalorder %s49, %s50
    %p62 = scmp.eq.s32.totalorder %s19, 3
    %p63 = por %p61, %p62
    %p65 = scmp.ne.s32.totalorder %s50, %s64
    %p66 = scmp.eq.s32.totalorder %s19, 0
    %p67 = por %p65, %p66
    %s69 = sadd.s32 %s68, 1
    %p72 = scmp.eq.s32.totalorder %s13, 3
    %p73 = scmp.ne.s32.totalorder %s68, %s70
    %p74 = scmp.eq.s32.totalorder %s13, 0
    %p75 = por %p73, %p74
    %p76 = scmp.ne.s32.totalorder %s68, %s70
    %p77 = scmp.eq.s32.totalorder %s18, 3
    %p78 = por %p76, %p77
    %p79 = scmp.ne.s32.totalorder %s70, %s71
    %p80 = scmp.eq.s32.totalorder %s18, 0
    %p81 = por %p79, %p80
    %p82 = scmp.ne.s32.totalorder %s70, %s71
    %p83 = scmp.eq.s32.totalorder %s19, 3
    %p84 = por %p82, %p83
    %p86 = scmp.ne.s32.totalorder %s71, %s85
    %p87 = scmp.eq.s32.totalorder %s19, 0
    %p88 = por %p86, %p87
    %s90 = sadd.s32 %s89, 1
    %p93 = scmp.eq.s32.totalorder %s13, 3
    %p94 = scmp.ne.s32.totalorder %s89, %s91
    %p95 = scmp.eq.s32.totalorder %s13, 0
    %p96 = por %p94, %p95
    %p97 = scmp.ne.s32.totalorder %s89, %s91
    %p98 = scmp.eq.s32.totalorder %s18, 3
    %p99 = por %p97, %p98
    %p100 = scmp.ne.s32.totalorder %s91, %s92
    %p101 = scmp.eq.s32.totalorder %s18, 0
    %p102 = por %p100, %p101
    %p103 = scmp.ne.s32.totalorder %s91, %s92
    %p104 = scmp.eq.s32.totalorder %s19, 3
    %p105 = por %p103, %p104
    %p107 = scmp.ne.s32.totalorder %s92, %s106
    %p108 = scmp.eq.s32.totalorder %s19, 0
    %p109 = por %p107, %p108
    %s111 = sadd.s32 %s110, 1
    %p114 = scmp.eq.s32.totalorder %s13, 3
    %p115 = scmp.ne.s32.totalorder %s110, %s112
    %p116 = scmp.eq.s32.totalorder %s13, 0
    %p117 = por %p115, %p116
    %p118 = scmp.ne.s32.totalorder %s110, %s112
    %p119 = scmp.eq.s32.totalorder %s18, 3
    %p120 = por %p118, %p119
    %p121 = scmp.ne.s32.totalorder %s112, %s113
    %p122 = scmp.eq.s32.totalorder %s18, 0
    %p123 = por %p121, %p122
    %p124 = scmp.ne.s32.totalorder %s112, %s113
    %p125 = scmp.eq.s32.totalorder %s19, 3
    %p126 = por %p124, %p125
    %p128 = scmp.ne.s32.totalorder %s113, %s127
    %p129 = scmp.eq.s32.totalorder %s19, 0
    %p130 = por %p128, %p129
    %s132 = sadd.s32 %s131, 1
    %p135 = scmp.eq.s32.totalorder %s13, 3
    %p136 = scmp.ne.s32.totalorder %s131, %s133
    %p137 = scmp.eq.s32.totalorder %s13, 0
    %p138 = por %p136, %p137
    %p139 = scmp.ne.s32.totalorder %s131, %s133
    %p140 = scmp.eq.s32.totalorder %s18, 3
    %p141 = por %p139, %p140
    %p142 = scmp.ne.s32.totalorder %s133, %s134
    %p143 = scmp.eq.s32.totalorder %s18, 0
    %p144 = por %p142, %p143
    %p145 = scmp.ne.s32.totalorder %s133, %s134
    %p146 = scmp.eq.s32.totalorder %s19, 3
    %p147 = por %p145, %p146
    %p149 = scmp.ne.s32.totalorder %s134, %s148
    %p150 = scmp.eq.s32.totalorder %s19, 0
    %p151 = por %p149, %p150
    %s152 = ssub.s32 %s13, %s20
    %p153 = scmp.eq.s32.totalorder %s152, 0
    %s155 = sadd.s32 %s154, 1
    %s156 = scalar_select %p153, %s154, %s155
    %p159 = pneg %p153
    %p160 = scmp.eq.s32.totalorder %s13, 3
    %p161 = por %p159, %p160
    %p162 = scmp.ne.s32.totalorder %s154, %s157
    %p163 = scmp.eq.s32.totalorder %s13, 0
    %p164 = por %p162, %p163
    %p165 = scmp.ne.s32.totalorder %s154, %s157
    %p166 = scmp.eq.s32.totalorder %s18, 3
    %p167 = por %p165, %p166
    %p168 = scmp.ne.s32.totalorder %s157, %s158
    %p169 = scmp.eq.s32.totalorder %s18, 0
    %p170 = por %p168, %p169
    %p171 = scmp.ne.s32.totalorder %s157, %s158
    %p172 = scmp.eq.s32.totalorder %s19, 3
    %p173 = por %p171, %p172
    %p175 = scmp.ne.s32.totalorder %s158, %s174
    %p176 = scmp.eq.s32.totalorder %s19, 0
    %p177 = por %p175, %p176
    %s178 = ssub.s32 %s13, %s20
    %p179 = scmp.eq.s32.totalorder %s178, 0
    %s181 = sadd.s32 %s180, 1
    %s182 = scalar_select %p179, %s180, %s181
    %p185 = pneg %p179
    %p186 = scmp.eq.s32.totalorder %s13, 3
    %p187 = por %p185, %p186
    %p188 = scmp.ne.s32.totalorder %s180, %s183
    %p189 = scmp.eq.s32.totalorder %s13, 0
    %p190 = por %p188, %p189
    %p191 = scmp.ne.s32.totalorder %s180, %s183
    %p192 = scmp.eq.s32.totalorder %s18, 3
    %p193 = por %p191, %p192
    %p194 = scmp.ne.s32.totalorder %s183, %s184
    %p195 = scmp.eq.s32.totalorder %s18, 0
    %p196 = por %p194, %p195
    %p197 = scmp.ne.s32.totalorder %s183, %s184
    %p198 = scmp.eq.s32.totalorder %s19, 3
    %p199 = por %p197, %p198
    %p201 = scmp.ne.s32.totalorder %s184, %s200
    %p202 = scmp.eq.s32.totalorder %s19, 0
    %p203 = por %p201, %p202
    %p204 = scmp.le.s32.totalorder 1, %s13
    %p205 = scmp.lt.s32.totalorder %s13, 5
    %p206 = pnand %p204, %p205
    %p207 = pneg %p206
    // Predicated region
    $region9: #{tpu_custom_call.1} parent=5 // pred_check
      _
    $region10: #{tpu_custom_call.1} parent=5 // pred_check_branch
      %209 = sbr.rel (%p206) target = $region12
    $region11: #{tpu_custom_call.1} parent=5 // pred_region
      %s210 = ssub.s32 %s13, 1
      // Predicated region
      $region13: #{tpu_custom_call.1} parent=11 // pred_check
        %p211 = pneg %p60
      $region14: #{tpu_custom_call.1} parent=11 // pred_check_branch
        %213 = sbr.rel (%p211) target = $region16
      $region15: #{tpu_custom_call.1} parent=11 // pred_region
        _
      $region16: #{tpu_custom_call.1} parent=11 // pred_fallthru
        _
      // Predicated region
      $region17: #{tpu_custom_call.1} parent=11 // pred_check
        %p214 = pneg %p81
      $region18: #{tpu_custom_call.1} parent=11 // pred_check_branch
        %216 = sbr.rel (%p214) target = $region20
      $region19: #{tpu_custom_call.1} parent=11 // pred_region
        _
      $region20: #{tpu_custom_call.1} parent=11 // pred_fallthru
        _
      // Predicated region
      $region21: #{tpu_custom_call.1} parent=11 // pred_check
        %p217 = pneg %p102
      $region22: #{tpu_custom_call.1} parent=11 // pred_check_branch
        %219 = sbr.rel (%p217) target = $region24
      $region23: #{tpu_custom_call.1} parent=11 // pred_region
        _
      $region24: #{tpu_custom_call.1} parent=11 // pred_fallthru
        _
      // Predicated region
      $region25: #{tpu_custom_call.1} parent=11 // pred_check
        %p220 = pneg %p123
      $region26: #{tpu_custom_call.1} parent=11 // pred_check_branch
        %222 = sbr.rel (%p220) target = $region28
      $region27: #{tpu_custom_call.1} parent=11 // pred_region
        _
      $region28: #{tpu_custom_call.1} parent=11 // pred_fallthru
        _
      // Predicated region
      $region29: #{tpu_custom_call.1} parent=11 // pred_check
        %p223 = pneg %p144
      $region30: #{tpu_custom_call.1} parent=11 // pred_check_branch
        %225 = sbr.rel (%p223) target = $region32
      $region31: #{tpu_custom_call.1} parent=11 // pred_region
        _
      $region32: #{tpu_custom_call.1} parent=11 // pred_fallthru
        _
    $region12: #{tpu_custom_call.1} parent=5 // pred_fallthru
      _
    %p226 = scmp.lt.s32.totalorder %s13, 4
    // Predicated region
    $region33: #{tpu_custom_call.1} parent=5 // pred_check
      %p227 = pneg %p226
    $region34: #{tpu_custom_call.1} parent=5 // pred_check_branch
      %229 = sbr.rel (%p227) target = $region36
    $region35: #{tpu_custom_call.1} parent=5 // pred_region
      // Predicated region
      $region37: #{tpu_custom_call.1} parent=35 // pred_check
        %p230 = pneg %p33
      $region38: #{tpu_custom_call.1} parent=35 // pred_check_branch
        %232 = sbr.rel (%p230) target = $region40
      $region39: #{tpu_custom_call.1} parent=35 // pred_region
        %s233 = smul.u32 2, %s13
        %p234 = scmp.lt.s32.totalorder %s233, 7
        %s235 = scalar_select %p234, %s233, 7
        %s236 = smul.addr %s235, 8
        %s237 = scalar_lea.vmem %s0, %s236
        %s238 = smul.u32 2, %s13
      $region40: #{tpu_custom_call.1} parent=35 // pred_fallthru
        _
      // Predicated region
      $region41: #{tpu_custom_call.1} parent=35 // pred_check
        %p239 = pneg %p164
      $region42: #{tpu_custom_call.1} parent=35 // pred_check_branch
        %241 = sbr.rel (%p239) target = $region44
      $region43: #{tpu_custom_call.1} parent=35 // pred_region
        %s242 = smul.u32 2, %s13
        %p243 = scmp.lt.s32.totalorder %s242, 7
        %s244 = scalar_select %p243, %s242, 7
        %s245 = smul.addr %s244, 8
        %s246 = scalar_lea.vmem %s6, %s245
        %s247 = smul.u32 2, %s13
      $region44: #{tpu_custom_call.1} parent=35 // pred_fallthru
        _
    $region36: #{tpu_custom_call.1} parent=5 // pred_fallthru
      _
    %p248 = scmp.le.s32.totalorder 1, %s13
    %p249 = scmp.lt.s32.totalorder %s13, 5
    %p250 = pnand %p248, %p249
    %p251 = pneg %p250
    // Predicated region
    $region45: #{tpu_custom_call.1} parent=5 // pred_check
      _
    $region46: #{tpu_custom_call.1} parent=5 // pred_check_branch
      %253 = sbr.rel (%p250) target = $region48
    $region47: #{tpu_custom_call.1} parent=5 // pred_region
      %s254 = ssub.s32 %s13, 1
      %s255 = smul.u32 2, %s18
      %p256 = scmp.lt.s32.totalorder %s255, 7
      %s257 = scalar_select %p256, %s255, 7
      %s258 = smul.addr %s257, 8
      %s259 = scalar_lea.vmem %s0, %s258
      %p260 = pneg %p39
      %p261 = pneg %p36
      %p262 = pneg %p60
      %p263 = pneg %p57
      %p264 = pneg %p81
      %p265 = pneg %p78
      %p266 = pneg %p102
      %p267 = pneg %p99
      %p268 = pneg %p123
      %p269 = pneg %p120
      %p270 = pneg %p144
      %p271 = pneg %p141
      %s272 = smul.u32 2, %s18
      %p273 = scmp.lt.s32.totalorder %s272, 7
      %s274 = scalar_select %p273, %s272, 7
      %s275 = smul.addr %s274, 8
      %s276 = scalar_lea.vmem %s6, %s275
      %p277 = pneg %p170
      %p278 = pneg %p167
      %p279 = pneg %p196
      %p280 = pneg %p193
      %s281 = smul.u32 2, %s18
      %p282 = scmp.lt.s32.totalorder %s281, 7
      %s283 = scalar_select %p282, %s281, 7
      %s284 = smul.addr %s283, 8
      %s285 = scalar_lea.vmem %s7, %s284
      %s286 = smul.u32 2, %s18
      %p287 = scmp.lt.s32.totalorder %s286, 7
      %s288 = scalar_select %p287, %s286, 7
      %s289 = smul.addr %s288, 8
      %s290 = scalar_lea.vmem %s0, %s289
      %s291 = smul.u32 2, %s18
      %s292 = smul.u32 2, %s18
      %p293 = scmp.lt.s32.totalorder %s292, 7
      %s294 = scalar_select %p293, %s292, 7
      %s295 = smul.addr %s294, 8
      %s296 = scalar_lea.vmem %s6, %s295
      %s297 = smul.u32 2, %s18
      %s298 = smul.u32 2, %s18
      %p299 = scmp.lt.s32.totalorder %s298, 7
      %s300 = scalar_select %p299, %s298, 7
      %s301 = smul.addr %s300, 8
      %s302 = scalar_lea.vmem %s7, %s301
      %s303 = smul.u32 2, %s18
      %v304 = vld [vmem:[%s290] sm:$0xff]
      %v305 = vld [vmem:[%s290 + $0x8] sm:$0xff]
      %v306 = vld [vmem:[%s296] sm:$0xff]
      %v307 = vld [vmem:[%s296 + $0x8] sm:$0xff]
      %v308 = vld [vmem:[%s1] sm:$0xff]
      %v309 = vld [vmem:[%s1 + $0x8] sm:$0xff]
      %v310 = vld [vmem:[%s1 + $0x10] sm:$0xff]
      %v311 = vld [vmem:[%s1 + $0x18] sm:$0xff]
      %v312 = vld [vmem:[%s2] sm:$0x1]
      %v314 = vlaneseq
      %v315 = vshrl.u32 %v314, 7
      %v316 = vsub.s32 0, %v315
      %v317 = vrot.slane %v312, %v316
      %vm319 = vcmask 261120
      %v321 = vsel %vm319, %v304, 0
      %v324 = vsel %vm319, %v305, 0
      %326 = vmatprep.subr.mxu0 0.0
      %327 = vmatpush1.msra.mxu0 0.0
      %328 = vmatprep.subr.mxu0 0.0
      %329 = vmatpush1.msra.mxu0 0.0
      %330 = vmatprep.subr.mxu0 0.0
      %331 = vmatpush1.msra.mxu0 0.0
      %332 = vmatprep.subr.mxu0 0.0
      %333 = vmatpush1.msra.mxu0 0.0
      %334 = vmatprep.subr.mxu0 0.0
      %335 = vmatpush1.msra.mxu0 0.0
      %336 = vmatprep.subr.mxu0 0.0
      %337 = vmatpush1.msra.mxu0 0.0
      %338 = vmatprep.subr.mxu0 0.0
      %339 = vmatpush1.msra.mxu0 0.0
      %340 = vmatprep.subr.mxu0 0.0
      %341 = vmatpush1.msra.mxu0 0.0
      %342 = vmatprep.subr.mxu0 0.0
      %343 = vmatpush1.msra.mxu0 0.0
      %344 = vmatprep.subr.mxu0 0.0
      %345 = vmatpush1.msra.mxu0 0.0
      %346 = vmatprep.subr.mxu0 0.0
      %347 = vmatpush1.msra.mxu0 0.0
      %348 = vmatprep.subr.mxu0 0.0
      %349 = vmatpush1.msra.mxu0 0.0
      %350 = vmatprep.subr.mxu0 0.0
      %351 = vmatpush1.msra.mxu0 %v311
      %352 = vmatprep.subr.mxu0 0.0
      %353 = vmatpush1.msra.mxu0 %v310
      %354 = vmatprep.subr.mxu0 0.0
      %355 = vmatpush1.msra.mxu0 %v309
      %356 = vmatprep.subr.mxu0 0.0
      %357 = vmatpush1.msra.mxu0 %v308
      %358 = vmatprep.subr.mxu0 0.0
      %359 = vmatpush2.msra.mxu0 0.0
      %360 = vmatprep.subr.mxu0 0.0
      %361 = vmatpush2.msra.mxu0 0.0
      %362 = vmatprep.subr.mxu0 0.0
      %363 = vmatpush2.msra.mxu0 0.0
      %364 = vmatprep.subr.mxu0 0.0
      %365 = vmatpush2.msra.mxu0 0.0
      %366 = vmatprep.subr.mxu0 0.0
      %367 = vmatpush2.msra.mxu0 0.0
      %368 = vmatprep.subr.mxu0 0.0
      %369 = vmatpush2.msra.mxu0 0.0
      %370 = vmatprep.subr.mxu0 0.0
      %371 = vmatpush2.msra.mxu0 0.0
      %372 = vmatprep.subr.mxu0 0.0
      %373 = vmatpush2.msra.mxu0 0.0
      %374 = vmatprep.subr.mxu0 0.0
      %375 = vmatpush2.msra.mxu0 0.0
      %376 = vmatprep.subr.mxu0 0.0
      %377 = vmatpush2.msra.mxu0 0.0
      %378 = vmatprep.subr.mxu0 0.0
      %379 = vmatpush2.msra.mxu0 0.0
      %380 = vmatprep.subr.mxu0 0.0
      %381 = vmatpush2.msra.mxu0 0.0
      %382 = vmatprep.subr.mxu0 0.0
      %383 = vmatpush2.msra.mxu0 0.0
      %384 = vmatprep.subr.mxu0 0.0
      %385 = vmatpush2.msra.mxu0 0.0
      %386 = vmatprep.subr.mxu0 0.0
      %387 = vmatpush2.msra.mxu0 0.0
      %388 = vmatprep.subr.mxu0 0.0
      %389 = vmatpush2.msra.mxu0 0.0
      %390 = vmatprep.mubr.f32.mxu0 0.0
      %391 = vmatmul.mubr.f32.gmra.mxu0 %v321
      %v392 = vpop.f32.mrf.mxu0
      %v393 = vadd.f32 %v317, %v392
      %v394 = vpop.f32.mrf.mxu0
      %395 = vmatprep.mubr.f32.mxu0 0.0
      %396 = vmatmul.mubr.f32.gmra.mxu0 %v324
      %v397 = vpop.f32.mrf.mxu0
      %v398 = vadd.f32 %v317, %v397
      %v399 = vpop.f32.mrf.mxu0
      %400 = vdwg.mxu0
      %v401 = vmax.f32 %v393, 0.0
      %v402 = vmax.f32 %v398, 0.0
      %v403 = vld [vmem:[%s3] sm:$0xff]
      %v404 = vld [vmem:[%s3 + $0x8] sm:$0xff]
      %v405 = vld [vmem:[%s3 + $0x10] sm:$0xff]
      %v406 = vld [vmem:[%s3 + $0x18] sm:$0xff]
      %v407 = vld [vmem:[%s3 + $0x20] sm:$0xff]
      %v408 = vld [vmem:[%s3 + $0x28] sm:$0xff]
      %v409 = vld [vmem:[%s3 + $0x30] sm:$0xff]
      %v410 = vld [vmem:[%s3 + $0x38] sm:$0xff]
      %v411 = vld [vmem:[%s4] sm:$0x1]
      %v413 = vlaneseq
      %v414 = vshrl.u32 %v413, 7
      %v415 = vsub.s32 0, %v414
      %v416 = vrot.slane %v411, %v415
      %vm418 = vcmask 523264
      %v420 = vsel %vm418, %v401, 0
      %v423 = vsel %vm418, %v402, 0
      %425 = vmatprep.subr.mxu0 0.0
      %426 = vmatpush1.msra.mxu0 0.0
      %427 = vmatprep.subr.mxu0 0.0
      %428 = vmatpush1.msra.mxu0 0.0
      %429 = vmatprep.subr.mxu0 0.0
      %430 = vmatpush1.msra.mxu0 0.0
      %431 = vmatprep.subr.mxu0 0.0
      %432 = vmatpush1.msra.mxu0 0.0
      %433 = vmatprep.subr.mxu0 0.0
      %434 = vmatpush1.msra.mxu0 0.0
      %435 = vmatprep.subr.mxu0 0.0
      %436 = vmatpush1.msra.mxu0 0.0
      %437 = vmatprep.subr.mxu0 0.0
      %438 = vmatpush1.msra.mxu0 0.0
      %439 = vmatprep.subr.mxu0 0.0
      %440 = vmatpush1.msra.mxu0 0.0
      %441 = vmatprep.subr.mxu0 0.0
      %442 = vmatpush1.msra.mxu0 %v410
      %443 = vmatprep.subr.mxu0 0.0
      %444 = vmatpush1.msra.mxu0 %v409
      %445 = vmatprep.subr.mxu0 0.0
      %446 = vmatpush1.msra.mxu0 %v408
      %447 = vmatprep.subr.mxu0 0.0
      %448 = vmatpush1.msra.mxu0 %v407
      %449 = vmatprep.subr.mxu0 0.0
      %450 = vmatpush1.msra.mxu0 %v406
      %451 = vmatprep.subr.mxu0 0.0
      %452 = vmatpush1.msra.mxu0 %v405
      %453 = vmatprep.subr.mxu0 0.0
      %454 = vmatpush1.msra.mxu0 %v404
      %455 = vmatprep.subr.mxu0 0.0
      %456 = vmatpush1.msra.mxu0 %v403
      %457 = vmatprep.subr.mxu0 0.0
      %458 = vmatpush2.msra.mxu0 0.0
      %459 = vmatprep.subr.mxu0 0.0
      %460 = vmatpush2.msra.mxu0 0.0
      %461 = vmatprep.subr.mxu0 0.0
      %462 = vmatpush2.msra.mxu0 0.0
      %463 = vmatprep.subr.mxu0 0.0
      %464 = vmatpush2.msra.mxu0 0.0
      %465 = vmatprep.subr.mxu0 0.0
      %466 = vmatpush2.msra.mxu0 0.0
      %467 = vmatprep.subr.mxu0 0.0
      %468 = vmatpush2.msra.mxu0 0.0
      %469 = vmatprep.subr.mxu0 0.0
      %470 = vmatpush2.msra.mxu0 0.0
      %471 = vmatprep.subr.mxu0 0.0
      %472 = vmatpush2.msra.mxu0 0.0
      %473 = vmatprep.subr.mxu0 0.0
      %474 = vmatpush2.msra.mxu0 0.0
      %475 = vmatprep.subr.mxu0 0.0
      %476 = vmatpush2.msra.mxu0 0.0
      %477 = vmatprep.subr.mxu0 0.0
      %478 = vmatpush2.msra.mxu0 0.0
      %479 = vmatprep.subr.mxu0 0.0
      %480 = vmatpush2.msra.mxu0 0.0
      %481 = vmatprep.subr.mxu0 0.0
      %482 = vmatpush2.msra.mxu0 0.0
      %483 = vmatprep.subr.mxu0 0.0
      %484 = vmatpush2.msra.mxu0 0.0
      %485 = vmatprep.subr.mxu0 0.0
      %486 = vmatpush2.msra.mxu0 0.0
      %487 = vmatprep.subr.mxu0 0.0
      %488 = vmatpush2.msra.mxu0 0.0
      %489 = vmatprep.mubr.f32.mxu0 0.0
      %490 = vmatmul.mubr.f32.gmra.mxu0 %v420
      %v491 = vpop.f32.mrf.mxu0
      %v492 = vadd.f32 %v416, %v491
      %v493 = vpop.f32.mrf.mxu0
      %494 = vmatprep.mubr.f32.mxu0 0.0
      %495 = vmatmul.mubr.f32.gmra.mxu0 %v423
      %v496 = vpop.f32.mrf.mxu0
      %v497 = vadd.f32 %v416, %v496
      %v498 = vpop.f32.mrf.mxu0
      %499 = vdwg.mxu0
      %v500 = vld [vmem:[%s5] sm:$0x1]
      %v501 = vlog2.pop %v500
      %v502 = vmul.f32 %v501, 0.6931472
      %vm503 = vcmask 24576
      %v504 = vsel %vm503, %v502, 0.0
      %505 = vadd.xlane.f32.xlu0 %v504
      %v506 = vpop.xlane.xlu0 %505
      %v508 = vlaneseq
      %v509 = vshrl.u32 %v508, 7
      %v510 = vsub.s32 0, %v509
      %v511 = vrot.slane %v500, %v510
      %v513 = vmul.f32 %v511, %v306
      %v514 = vmul.f32 %v511, %v307
      %v515 = vadd.f32 %v492, %v513
      %v516 = vadd.f32 %v497, %v514
      %v517 = vmul.f32 %v306, %v306
      %v518 = vmul.f32 %v307, %v307
      %vm519 = vcmask 31744
      %v520 = vsel %vm519, %v517, 0.0
      %521 = vadd.xlane.f32.xlu0 %v520
      %v522 = vpop.xlane.xlu0 %521
      %v523 = vsel %vm519, %v518, 0.0
      %524 = vadd.xlane.f32.xlu0 %v523
      %v525 = vpop.xlane.xlu0 %524
      %v526 = vmul.f32 %v522, -0.5
      %v527 = vmul.f32 %v525, -0.5
      %v528 = vlaneseq
      %v529 = vshrl.u32 %v528, 7
      %v530 = vsub.s32 0, %v529
      %v531 = vrot.slane %v506, %v530
      %v532 = vsub.f32 %v526, %v531
      %v533 = vsub.f32 %v527, %v531
      %v534 = vsub.f32 %v532, 3.675754
      %v535 = vsub.f32 %v533, 3.675754
      %v536 = vmax.f32 %v515, -1.0
      %v537 = vmax.f32 %v516, -1.0
      %v538 = vmin.f32 %v536, 1.0
      %v539 = vmin.f32 %v537, 1.0
      %540 = vst.msk [vmem:[%s302] sm:$0xff] %vm519, %v538
      %541 = vst.msk [vmem:[%s302 + $0x8] sm:$0xff] %vm519, %v539
      %vm542 = vcmask 39968
      %543 = vst.msk [vmem:[%s302] sm:$0xff] %vm542, %v534
      %544 = vst.msk [vmem:[%s302 + $0x8] sm:$0xff] %vm542, %v535
      %547 = vrot.lane.b32.xlu0 %v492, 1
      %v548 = vpop.permute.xlu0 %547
      %549 = vrot.lane.b32.xlu0 %v497, 1
      %v550 = vpop.permute.xlu0 %549
      %vm553 = vcmask 48168
      %554 = vst.msk [vmem:[%s302] sm:$0xff] %vm553, %v548
      %555 = vst.msk [vmem:[%s302 + $0x8] sm:$0xff] %vm553, %v550
      %s556 = smul.u32 2, %s18
      %p557 = scmp.lt.s32.totalorder %s556, 7
      %s558 = scalar_select %p557, %s556, 7
      %s559 = smul.addr %s558, 8
      %s560 = scalar_lea.vmem %s7, %s559
      // Predicated region
      $region49: #{tpu_custom_call.1} parent=47 // pred_check
        %p561 = pneg %p193
      $region50: #{tpu_custom_call.1} parent=47 // pred_check_branch
        %563 = sbr.rel (%p561) target = $region52
      $region51: #{tpu_custom_call.1} parent=47 // pred_region
        %s564 = smul.u32 2, %s18
      $region52: #{tpu_custom_call.1} parent=47 // pred_fallthru
        _
    $region48: #{tpu_custom_call.1} parent=5 // pred_fallthru
      _
    %p565 = scmp.le.s32.totalorder 2, %s13
    // Predicated region
    $region53: #{tpu_custom_call.1} parent=5 // pred_check
      %p566 = pneg %p565
    $region54: #{tpu_custom_call.1} parent=5 // pred_check_branch
      %568 = sbr.rel (%p566) target = $region56
    $region55: #{tpu_custom_call.1} parent=5 // pred_region
      %s569 = ssub.s32 %s13, 2
      // Predicated region
      $region57: #{tpu_custom_call.1} parent=55 // pred_check
        %p570 = pneg %p199
      $region58: #{tpu_custom_call.1} parent=55 // pred_check_branch
        %572 = sbr.rel (%p570) target = $region60
      $region59: #{tpu_custom_call.1} parent=55 // pred_region
        %s573 = smul.u32 2, %s19
        %p574 = scmp.lt.s32.totalorder %s573, 7
        %s575 = scalar_select %p574, %s573, 7
        %s576 = smul.addr %s575, 8
        %s577 = scalar_lea.vmem %s7, %s576
      $region60: #{tpu_custom_call.1} parent=55 // pred_fallthru
        _
    $region56: #{tpu_custom_call.1} parent=5 // pred_fallthru
      _
  $region6: #{tpu_custom_call.1} parent=0 // loop_footer
    %s17 = sadd.s32 1, %s13
  $region7: #{tpu_custom_call.1} parent=0 // loop_footer_branch
    %12 = sbr.rel target = $region3
  $region8: #{tpu_custom_call.1} parent=0 // loop_exit
    _

</llo_original>
